<compile_context>
chip_gen: v7x
topology: tpu7x:2x2x1
jax: 0.10.0
libtpu: 0.0.40
codegen_flags: <defaults>
</compile_context>

<pallas_src>
import functools

import jax
import jax.numpy as jnp
from jax import lax
from jax.experimental import pallas as pl
from jax.experimental.pallas import tpu as pltpu


def _round_up(x, m):
    return ((x + m - 1) // m) * m


def _cdiv(a, b):
    return (a + b - 1) // b


def _min_sublanes(dtype):
    """Minimum sublane multiple for a packed dtype (f32->8, bf16->16, i8->32)."""
    itemsize = jnp.dtype(dtype).itemsize
    return 8 * max(1, 4 // max(1, itemsize))


def _default_num_parts():
    # v7x has 2 TensorCores per chip; shard the leading "parallel" grid axis
    # across them.  v5e/v6e have 1 TC (a size-1 parallel axis is free).
    try:
        kind = jax.devices()[0].device_kind.lower()
        if "7" in kind:
            return 2
    except Exception:
        pass
    return 1


def _margin_loss_labels_kernel(lbl_ref, act_ref, out_ref, *,
                               m_plus, m_minus, lam, batch, tile_rows,
                               tiles_per_part, needs_mask):
    """Integer-label path: builds T_k in-kernel from a (TB, 1) int32 block.

    out_ref is a per-part resident (1, 128) f32 accumulator; all 128 lanes
    hold the same running partial (the wrapper reads lane 0 of each part).
    """
    c = pl.program_id(0)
    i = pl.program_id(1)

    @pl.when(i == 0)
    def _init():
        out_ref[...] = jnp.zeros_like(out_ref)

    tb, nc = act_ref.shape
    act = act_ref[...].astype(jnp.float32)
    cols = lax.broadcasted_iota(jnp.int32, (tb, nc), 1)
    t_mask = cols == lbl_ref[...]                       # (TB,1) bcast -> (TB,nc)

    correct = jnp.maximum(m_plus - act, 0.0) ** 2
    incorrect = lam * jnp.maximum(act - m_minus, 0.0) ** 2
    loss = jnp.where(t_mask, correct, incorrect)

    partial = jnp.sum(loss, axis=1, keepdims=True)       # lane reduce -> (TB,1)

    if needs_mask:
        # Cheap post-reduce row mask on a (TB,1) column.  Logical rows come
        # from the *unclamped* tile index, so padded rows of the last tile
        # and duplicated (clamped) trailing tiles contribute exactly 0.
        # NOTE: relies on jnp.where's select not propagating garbage from the
        # unselected operand -- keep the mask as a select after the reduce.
        tile_idx = c * tiles_per_part + i
        rows = tile_idx * tile_rows + lax.broadcasted_iota(jnp.int32, (tb, 1), 0)
        partial = jnp.where(rows < batch, partial, 0.0)

    tile_sum = jnp.sum(partial, axis=0, keepdims=True)   # sublane reduce -> (1,1)
    out_ref[...] += tile_sum                             # lane-broadcast add


def _margin_loss_flat_kernel(act_ref, tk_ref, out_ref, *, m_plus, m_minus, lam):
    """Explicit-targets path on a lane-dense, zero-padded (rows, 128) layout.

    Zero padding gives t_k = act = 0 -> exactly 0 loss, so no masking needed.
    out_ref is a per-part resident (1, 128) block holding per-lane partials;
    the wrapper sums every lane of every part.
    """
    i = pl.program_id(1)

    @pl.when(i == 0)
    def _init():
        out_ref[...] = jnp.zeros_like(out_ref)

    act = act_ref[...].astype(jnp.float32)
    t_k = tk_ref[...].astype(jnp.float32)
    correct = t_k * jnp.maximum(m_plus - act, 0.0) ** 2
    incorrect = (1.0 - t_k) * lam * jnp.maximum(act - m_minus, 0.0) ** 2
    out_ref[...] += jnp.sum(correct + incorrect, axis=0, keepdims=True)  # (1,128)


def margin_loss(class_caps_activations, targets, *,
                batch_averaged=True, margin_loss_lambda=0.5,
                m_plus=0.9, m_minus=0.1,
                tile_rows=4096, flat_tile_rows=2048, num_parts=None):
    """JAX/Pallas equivalent of MarginLoss.forward.  Returns an f32 scalar."""
    b, num_classes = class_caps_activations.shape
    if num_parts is None:
        num_parts = _default_num_parts()
    num_parts = max(1, int(num_parts))

    m_plus = float(m_plus)
    m_minus = float(m_minus)
    lam = float(margin_loss_lambda)
    cparams = pltpu.CompilerParams(dimension_semantics=("parallel", "arbitrary"))

    if targets.ndim == 1:
        # ---- Integer labels: ship 4 B/row and build T_k in-kernel. ----
        act_itemsize = jnp.dtype(class_caps_activations.dtype).itemsize
        sl = _min_sublanes(class_caps_activations.dtype)
        # Keep double-buffered, lane-padded (tb, 128) activation tiles under
        # ~8 MiB (safe inside v5e's 16 MiB scoped-VMEM default, v7x's 32 MiB).
        cap_rows = max(sl, ((8 << 20) // (128 * act_itemsize * 2)) // sl * sl)
        tb = _round_up(min(int(tile_rows), max(b, 1)), sl)
        tb = min(tb, cap_rows)

        total_tiles = _cdiv(b, tb)
        np_eff = min(num_parts, total_tiles)
        tiles_per_part = _cdiv(total_tiles, np_eff)
        needs_mask = (b % tb != 0) or (np_eff * tiles_per_part != total_tiles)

        def row_map(c, i, _tpp=tiles_per_part, _last=total_tiles - 1):
            # Clamp so trailing (duplicate) tiles never start past the array;
            # their contribution is zeroed by the in-kernel row mask.
            return (jnp.minimum(c * _tpp + i, _last), 0)

        labels = targets.astype(jnp.int32).reshape(b, 1)
        kernel = functools.partial(
            _margin_loss_labels_kernel,
            m_plus=m_plus, m_minus=m_minus, lam=lam,
            batch=int(b), tile_rows=int(tb),
            tiles_per_part=int(tiles_per_part), needs_mask=bool(needs_mask))

        out = pl.pallas_call(
            kernel,
            out_shape=jax.ShapeDtypeStruct((1, np_eff * 128), jnp.float32),
            grid=(np_eff, tiles_per_part),
            in_specs=[pl.BlockSpec((tb, 1), row_map),
                      pl.BlockSpec((tb, num_classes), row_map)],
            out_specs=pl.BlockSpec((1, 128), lambda c, i: (0, c)),
            compiler_params=cparams,
        )(labels, class_caps_activations)

        # Every lane within a part holds the same value; take lane 0 per part.
        loss = jnp.sum(out.reshape(np_eff, 128)[:, 0])
    else:
        # ---- Explicit (one-hot / soft) targets: lane-dense flat layout. ----
        # TODO(synk): if the caller's 2-D targets are known one-hot, argmax
        # them and call this with integer labels (no [b, B] target traffic).
        act_itemsize = jnp.dtype(class_caps_activations.dtype).itemsize
        tgt_itemsize = jnp.dtype(targets.dtype).itemsize
        sl = max(_min_sublanes(class_caps_activations.dtype),
                 _min_sublanes(targets.dtype))

        total = b * num_classes
        rows_needed = max(1, _cdiv(total, 128))
        tbf_req = _round_up(rows_needed, sl)
        tbf_user = _round_up(max(sl, int(flat_tile_rows)), sl)
        cap_rows = max(sl, ((8 << 20) //
                            (128 * (act_itemsize + tgt_itemsize) * 2)) // sl * sl)
        tbf = max(sl, min(tbf_req, tbf_user, cap_rows))

        total_tiles = _cdiv(rows_needed, tbf)
        np_eff = min(num_parts, total_tiles)
        tiles_per_part = _cdiv(total_tiles, np_eff)
        padded_rows = np_eff * tiles_per_part * tbf
        pad = padded_rows * 128 - total

        acts2d = jnp.pad(jnp.ravel(class_caps_activations),
                         (0, pad)).reshape(padded_rows, 128)
        tk2d = jnp.pad(jnp.ravel(targets), (0, pad)).reshape(padded_rows, 128)

        def row_map(c, i, _tpp=tiles_per_part):
            return (c * _tpp + i, 0)

        kernel = functools.partial(
            _margin_loss_flat_kernel, m_plus=m_plus, m_minus=m_minus, lam=lam)

        out = pl.pallas_call(
            kernel,
            out_shape=jax.ShapeDtypeStruct((1, np_eff * 128), jnp.float32),
            grid=(np_eff, tiles_per_part),
            in_specs=[pl.BlockSpec((tbf, 128), row_map),
                      pl.BlockSpec((tbf, 128), row_map)],
            out_specs=pl.BlockSpec((1, 128), lambda c, i: (0, c)),
            compiler_params=cparams,
        )(acts2d, tk2d)

        loss = jnp.sum(out)

    if batch_averaged:
        loss = loss / jnp.float32(b)
    return loss


def _margin_loss_ref(act, t_k, *, batch_averaged=True,
                     margin_loss_lambda=0.5, m_plus=0.9, m_minus=0.1):
    """Pure-JAX reference for correctness checking."""
    act = act.astype(jnp.float32)
    t_k = t_k.astype(jnp.float32)
    correct = t_k * jnp.maximum(m_plus - act, 0.0) ** 2
    incorrect = (1.0 - t_k) * margin_loss_lambda * jnp.maximum(act - m_minus, 0.0) ** 2
    loss = jnp.sum(correct + incorrect, axis=-1)
    return jnp.mean(loss) if batch_averaged else jnp.sum(loss)


if __name__ == "__main__":
    key = jax.random.PRNGKey(0)
    k_act, k_lbl, k_soft, k3, k4 = jax.random.split(key, 5)

    # Small case matching the module spec: [b, B] activations in [0, 1].
    batch, num_classes = 8, 16
    acts = jax.random.uniform(k_act, (batch, num_classes), dtype=jnp.float32)
    labels = jax.random.randint(k_lbl, (batch,), 0, num_classes)
    targets_onehot = jax.nn.one_hot(labels, num_classes, dtype=jnp.float32)

    loss_onehot = margin_loss(acts, targets_onehot)          # explicit-targets path
    loss_labels = margin_loss(acts, labels)                   # integer-label path
    jax.block_until_ready((loss_onehot, loss_labels))

    ref = _margin_loss_ref(acts, targets_onehot)
    assert jnp.allclose(loss_onehot, ref, atol=1e-5, rtol=1e-5), (loss_onehot, ref)
    assert jnp.allclose(loss_labels, ref, atol=1e-5, rtol=1e-5), (loss_labels, ref)

    # Soft (non-one-hot) targets exercise the general flat path.
    soft = jax.random.uniform(k_soft, (batch, num_classes), dtype=jnp.float32)
    loss_soft = margin_loss(acts, soft, batch_averaged=False)
    ref_soft = _margin_loss_ref(acts, soft, batch_averaged=False)
    jax.block_until_ready(loss_soft)
    assert jnp.allclose(loss_soft, ref_soft, atol=1e-5, rtol=1e-5), (loss_soft, ref_soft)

    # Larger batch, bf16 activations, non-multiple-of-tile batch, summed
    # reduction, and a forced 2-part "parallel" split (exercises the v7x
    # 2-TensorCore layout plus partial/duplicated-tile masking on any chip).
    b2, c2 = 300, 10
    acts2 = jax.random.uniform(k3, (b2, c2), dtype=jnp.float32).astype(jnp.bfloat16)
    labels2 = jax.random.randint(k4, (b2,), 0, c2)
    onehot2 = jax.nn.one_hot(labels2, c2, dtype=jnp.float32)
    ref2 = _margin_loss_ref(acts2.astype(jnp.float32), onehot2, batch_averaged=False)

    loss2a = margin_loss(acts2, labels2, batch_averaged=False,
                         tile_rows=128, num_parts=2)
    loss2b = margin_loss(acts2, onehot2, batch_averaged=False,
                         flat_tile_rows=8, num_parts=2)
    jax.block_until_ready((loss2a, loss2b))
    assert jnp.allclose(loss2a, ref2, atol=1e-2, rtol=1e-2), (loss2a, ref2)
    assert jnp.allclose(loss2b, ref2, atol=1e-2, rtol=1e-2), (loss2b, ref2)

    print("KERNEL_OK")
</pallas_src>

<mosaic_0001>
module attributes {stable_mosaic.version = 11 : i64} {
  func.func @_margin_loss_flat_kernel(%arg0: i32, %arg1: i32, %arg2: memref<8x128xf32, #tpu.memory_space<vmem>>, %arg3: memref<8x128xf32, #tpu.memory_space<vmem>>, %arg4: memref<1x128xf32, #tpu.memory_space<vmem>>) attributes {dimension_semantics = [#tpu.dimension_semantics<parallel>, #tpu.dimension_semantics<arbitrary>], iteration_bounds = array<i64: 1, 1>, scalar_prefetch = 0 : i64, scratch_operands = 0 : i64, tpu.core_type = #tpu.core_type<tc>, window_params = [{transform_indices = @transform_0, window_bounds = array<i64: 8, 128>}, {transform_indices = @transform_1, window_bounds = array<i64: 8, 128>}, {transform_indices = @transform_2, window_bounds = array<i64: 1, 128>}]} {
    %c0_i32 = arith.constant 0 : i32
    %0 = arith.cmpi eq, %arg1, %c0_i32 : i32
    %1 = arith.extui %0 : i1 to i32
    %c0_i32_0 = arith.constant 0 : i32
    %2 = arith.cmpi ne, %1, %c0_i32_0 : i32
    scf.if %2 {
      %cst_14 = arith.constant 0.000000e+00 : f32
      %27 = vector.broadcast %cst_14 : f32 to vector<1x128xf32>
      %c0_15 = arith.constant 0 : index
      %c0_16 = arith.constant 0 : index
      %28 = vector.load %arg4[%c0_15, %c0_16] : memref<1x128xf32, #tpu.memory_space<vmem>>, vector<1x128xf32>
      tpu.vector_store %arg4[%c0_15, %c0_16], %27 {strides = array<i32>} : memref<1x128xf32, #tpu.memory_space<vmem>>, vector<1x128xf32>,
    } else {
    }
    %c0 = arith.constant 0 : index
    %c0_1 = arith.constant 0 : index
    %3 = vector.load %arg2[%c0, %c0_1] : memref<8x128xf32, #tpu.memory_space<vmem>>, vector<8x128xf32>
    %c0_2 = arith.constant 0 : index
    %c0_3 = arith.constant 0 : index
    %4 = vector.load %arg3[%c0_2, %c0_3] : memref<8x128xf32, #tpu.memory_space<vmem>>, vector<8x128xf32>
    %cst = arith.constant 0.899999976 : f32
    %5 = vector.broadcast %cst : f32 to vector<8x128xf32>
    %6 = arith.subf %5, %3 : vector<8x128xf32>
    %cst_4 = arith.constant 0.000000e+00 : f32
    %7 = vector.broadcast %cst_4 : f32 to vector<8x128xf32>
    %8 = arith.maximumf %6, %7 : vector<8x128xf32>
    %9 = arith.mulf %8, %8 : vector<8x128xf32>
    %10 = arith.mulf %4, %9 : vector<8x128xf32>
    %cst_5 = arith.constant 1.000000e+00 : f32
    %11 = vector.broadcast %cst_5 : f32 to vector<8x128xf32>
    %12 = arith.subf %11, %4 : vector<8x128xf32>
    %cst_6 = arith.constant 5.000000e-01 : f32
    %13 = vector.broadcast %cst_6 : f32 to vector<8x128xf32>
    %14 = arith.mulf %12, %13 : vector<8x128xf32>
    %cst_7 = arith.constant 1.000000e-01 : f32
    %15 = vector.broadcast %cst_7 : f32 to vector<8x128xf32>
    %16 = arith.subf %3, %15 : vector<8x128xf32>
    %cst_8 = arith.constant 0.000000e+00 : f32
    %17 = vector.broadcast %cst_8 : f32 to vector<8x128xf32>
    %18 = arith.maximumf %16, %17 : vector<8x128xf32>
    %19 = arith.mulf %18, %18 : vector<8x128xf32>
    %20 = arith.mulf %14, %19 : vector<8x128xf32>
    %c0_9 = arith.constant 0 : index
    %c0_10 = arith.constant 0 : index
    %21 = vector.load %arg4[%c0_9, %c0_10] : memref<1x128xf32, #tpu.memory_space<vmem>>, vector<1x128xf32>
    %22 = arith.addf %10, %20 : vector<8x128xf32>
    %cst_11 = arith.constant dense<0.000000e+00> : vector<128xf32>
    %23 = vector.multi_reduction <add>, %22, %cst_11 [0] : vector<8x128xf32> to vector<128xf32>
    %24 = vector.shape_cast %23 : vector<128xf32> to vector<1x128xf32>
    %25 = arith.addf %21, %24 : vector<1x128xf32>
    %c0_12 = arith.constant 0 : index
    %c0_13 = arith.constant 0 : index
    %26 = vector.load %arg4[%c0_12, %c0_13] : memref<1x128xf32, #tpu.memory_space<vmem>>, vector<1x128xf32>
    tpu.vector_store %arg4[%c0_12, %c0_13], %25 {strides = array<i32>} : memref<1x128xf32, #tpu.memory_space<vmem>>, vector<1x128xf32>,
    return
  }
  func.func @transform_0(%arg0: i32, %arg1: i32) -> (i32, i32) {
    %c1_i32 = arith.constant 1 : i32
    %0 = arith.muli %arg0, %c1_i32 : i32
    %1 = arith.addi %0, %arg1 : i32
    %c0_i32 = arith.constant 0 : i32
    %c0_i32_0 = arith.constant 0 : i32
    return %1, %c0_i32 : i32, i32
  }
  func.func @transform_1(%arg0: i32, %arg1: i32) -> (i32, i32) {
    %c1_i32 = arith.constant 1 : i32
    %0 = arith.muli %arg0, %c1_i32 : i32
    %1 = arith.addi %0, %arg1 : i32
    %c0_i32 = arith.constant 0 : i32
    %c0_i32_0 = arith.constant 0 : i32
    return %1, %c0_i32 : i32, i32
  }
  func.func @transform_2(%arg0: i32, %arg1: i32) -> (i32, i32) {
    %c0_i32 = arith.constant 0 : i32
    %c0_i32_0 = arith.constant 0 : i32
    return %c0_i32, %arg0 : i32, i32
  }
}

</mosaic_0001>

<llo_original>
// kernel: tpu_custom_call.1
$region0: #{tpu_custom_call.1}
  #allocation0 [shape = 'u32[]', space=smem, size = 0x4, offset = 0x4, fixed_abs, tag = 'smem constant byte address 0x4 - core index']
  #allocation1 [shape = 'u32[144,128]{1,0:T(1,128)}', space=vmem, size = 0x12000, scoped, tag = 'internal scratch']
  %s0 = inlined_call_operand.hbm [shape: f32[8,128], index: 0, kind: input, shape index: {}]
  %s1 = inlined_call_operand.hbm [shape: f32[8,128], index: 1, kind: input, shape index: {}]
  %s2 = inlined_call_operand.hbm [shape: f32[1,128], index: 2, kind: output, shape index: {}]
  %s3 = sld [smem:[#allocation0]]
  $region30: #{tpu_custom_call.1} parent=0
    _
  %s5 = ssub.s32 1, %s3
  %s6 = scalar_select 0, %s5, %s3
  $region1: #{tpu_custom_call.1} parent=0
    #allocation2 [shape = 'u8[4096]{0}', space=vmem, size = 0x1000, scoped, tag = 'input window, operand 0, single buffered']
    #allocation3 [shape = 's32[1]{0}', space=sflag, size = 0x4, scoped, tag = 'scoped memory for tpu_custom_call.1']
    #allocation4 [shape = 's32[1]{0}', space=sflag, size = 0x4, scoped, tag = 'scoped memory for tpu_custom_call.1']
    #allocation5 [shape = 'u8[4096]{0}', space=vmem, size = 0x1000, scoped, tag = 'input window, operand 1, single buffered']
    #allocation6 [shape = 's32[1]{0}', space=sflag, size = 0x4, scoped, tag = 'scoped memory for tpu_custom_call.1']
    #allocation7 [shape = 'u8[512]{0}', space=vmem, size = 0x400, scoped, tag = 'output window, operand 0, single buffered']
    %7 = vsyncpa [#allocation3], 0
    %8 = vsyncpa [#allocation6], 0
    %9 = vsyncpa [#allocation4], 0
    // Predicated region
    $region2: #{tpu_custom_call.1} parent=1 // pred_check
      _
    $region3: #{tpu_custom_call.1} parent=1 // pred_check_branch
      %11 = sbr.rel (0) target = $region5
    $region4: #{tpu_custom_call.1} parent=1 // pred_region
      %s12 = sadd.s32 0, 0
      %s14 = ssub.s32 128, 128
      %15 = vsyncadd [#allocation3], %s14
      %s16 = smul.addr %s12, 128
      %s17 = scalar_lea.hbm %s0, %s16
      %s19 = sshll.u32 [#allocation2], 4
      %s20 = int_to_ptr.vmem [resolvable:$true] %s19
      %22 = dma.hbm_to_vmem [thread:$0]  %s17, 128, %s20, [#allocation3]
    $region5: #{tpu_custom_call.1} parent=1 // pred_fallthru
      _
    // Predicated region
    $region6: #{tpu_custom_call.1} parent=1 // pred_check
      _
    $region7: #{tpu_custom_call.1} parent=1 // pred_check_branch
      %24 = sbr.rel (0) target = $region9
    $region8: #{tpu_custom_call.1} parent=1 // pred_region
      %s25 = sadd.s32 0, 0
      %s27 = ssub.s32 128, 128
      %28 = vsyncadd [#allocation6], %s27
      %s29 = smul.addr %s25, 128
      %s30 = scalar_lea.hbm %s1, %s29
      %s32 = sshll.u32 [#allocation5], 4
      %s33 = int_to_ptr.vmem [resolvable:$true] %s32
      %35 = dma.hbm_to_vmem [thread:$0]  %s30, 128, %s33, [#allocation6]
    $region9: #{tpu_custom_call.1} parent=1 // pred_fallthru
      _
    // Predicated region
    $region10: #{tpu_custom_call.1} parent=1 // pred_check
      _
    $region11: #{tpu_custom_call.1} parent=1 // pred_check_branch
      %37 = sbr.rel (0) target = $region13
    $region12: #{tpu_custom_call.1} parent=1 // pred_region
      %38 = dma.done [#allocation3], 128
    $region13: #{tpu_custom_call.1} parent=1 // pred_fallthru
      _
    // Predicated region
    $region14: #{tpu_custom_call.1} parent=1 // pred_check
      _
    $region15: #{tpu_custom_call.1} parent=1 // pred_check_branch
      %40 = sbr.rel (0) target = $region17
    $region16: #{tpu_custom_call.1} parent=1 // pred_region
      %41 = dma.done [#allocation6], 128
    $region17: #{tpu_custom_call.1} parent=1 // pred_fallthru
      _
    %s42 = sadd.s32 0, 0
    %s43 = sadd.s32 0, 0
    %p44 = scmp.eq.s32.totalorder 0, 0
    // Predicated region
    $region18: #{tpu_custom_call.1} parent=1 // pred_check
      %p45 = pneg %p44
    $region19: #{tpu_custom_call.1} parent=1 // pred_check_branch
      %47 = sbr.rel (%p45) target = $region21
    $region20: #{tpu_custom_call.1} parent=1 // pred_region
      %48 = vst [vmem:[#allocation7] sm:$0x1] 0.0
    $region21: #{tpu_custom_call.1} parent=1 // pred_fallthru
      _
    %v49 = vld [vmem:[#allocation2] sm:$0xff]
    %v50 = vld [vmem:[#allocation5] sm:$0xff]
    %v51 = vsub.f32 0.9, %v49
    %v52 = vmax.f32 %v51, 0.0
    %v53 = vmul.f32 %v52, %v52
    %v54 = vmul.f32 %v50, %v53
    %v55 = vsub.f32 1.0, %v50
    %v56 = vmul.f32 %v55, 0.5
    %v57 = vsub.f32 %v49, 0.1
    %v58 = vmax.f32 %v57, 0.0
    %v59 = vmul.f32 %v58, %v58
    %v60 = vmul.f32 %v56, %v59
    %v61 = vld [vmem:[#allocation7] sm:$0x1]
    %v62 = vadd.f32 %v54, %v60
    %v63 = vrot.slane %v62, 4
    %v64 = vadd.f32 %v62, %v63
    %v65 = vrot.slane %v64, 2
    %v66 = vadd.f32 %v64, %v65
    %v67 = vrot.slane %v66, 1
    %v68 = vadd.f32 %v66, %v67
    %v69 = vadd.f32 %v61, %v68
    %70 = vst [vmem:[#allocation7] sm:$0x1] %v69
    // Predicated region
    $region22: #{tpu_custom_call.1} parent=1 // pred_check
      _
    $region23: #{tpu_custom_call.1} parent=1 // pred_check_branch
      %72 = sbr.rel (0) target = $region25
    $region24: #{tpu_custom_call.1} parent=1 // pred_region
      %s74 = ssub.s32 16, 16
      %75 = vsyncadd [#allocation4], %s74
      %s77 = sshll.u32 [#allocation7], 4
      %s78 = int_to_ptr.vmem [resolvable:$true] %s77
      %80 = dma.vmem_to_hbm [thread:$0]  %s78, 16, %s2, [#allocation4]
    $region25: #{tpu_custom_call.1} parent=1 // pred_fallthru
      _
    // Predicated region
    $region26: #{tpu_custom_call.1} parent=1 // pred_check
      _
    $region27: #{tpu_custom_call.1} parent=1 // pred_check_branch
      %82 = sbr.rel (0) target = $region29
    $region28: #{tpu_custom_call.1} parent=1 // pred_region
      %83 = dma.done [#allocation4], 16
    $region29: #{tpu_custom_call.1} parent=1 // pred_fallthru
      _
    %84 = vsyncpa [#allocation3], 1
    %85 = vsyncpa [#allocation6], 1
    %86 = vsyncpa [#allocation4], 1

</llo_original>
